<compile_context>
chip_gen: v5e
topology: v5e:2x2
jax: 0.10.0
libtpu: 0.0.40
codegen_flags: <defaults>
</compile_context>

<pallas_src>
import functools

import jax
import jax.numpy as jnp
from jax.experimental import pallas as pl
from jax.experimental.pallas import tpu as pltpu

# Finite sentinel for masked slots (positive column, padded rows).  In the epilogue
# these contribute l * exp(-1e30 - gmax), which flushes to exactly 0 in f32 as long
# as real negatives are > -1e30, so they never perturb the logsumexp (and never NaN).
_NEG_SENTINEL = -1e30


def _round_up(x, m):
    return ((x + m - 1) // m) * m


def _vmem_capacity_bytes():
    """Physical VMEM per TensorCore; falls back to the smallest (v7x: 64 MiB)."""
    cap = 64 * 1024 * 1024
    try:
        cap = int(pltpu.get_tpu_info().vmem_capacity_bytes)
    except Exception:
        pass
    return cap


def _stream_budget_bytes(cap):
    """Generation-aware budget for streamed blocks + scratch."""
    if cap >= 128 * 1024 * 1024:      # v5e / v6e: 128 MiB physical
        return 48 * 1024 * 1024
    return 24 * 1024 * 1024           # v7x: 64 MiB physical per TensorCore


def _resident_bytes(E, K, N, itemsize):
    """Estimated VMEM for the grid-resident operands (W.T, R, S)."""
    lane = lambda d: _round_up(max(int(d), 1), 128)
    sub = lambda d: _round_up(max(int(d), 1), 16)
    cols = (N + 1) * K
    wt = sub(E) * lane(K) * itemsize
    r = sub(K) * lane(cols) * 4
    s = sub(cols) * lane(N + 1) * 4
    # TODO(synk): mark the resident BlockSpecs pipeline_mode=pl.Buffered(1) (constant
    #   index_map => double-buffering is pure waste) and drop the 2x below.
    return 2 * (wt + r + s)


def _per_row_bytes(E, K, N, itemsize):
    """VMEM per row of tile_m: double-buffered streams + f32 accumulators."""
    lane = lambda d: _round_up(max(int(d), 1), 128)
    cols = (N + 1) * K
    streams = 2 * itemsize * (lane(E) + lane(cols))     # double-buffered C + x12 blocks
    scratch = 3 * 4 * lane(N + 1)                       # pos / m / l f32 accumulators
    return streams + scratch


def _choose_tile_m(M, E, K, N, itemsize, budget_bytes):
    """Largest tile_m (multiple of 16, <= 4096) fitting the streamed-block budget."""
    avail = max(budget_bytes - _resident_bytes(E, K, N, itemsize), 512 * 1024)
    t = int(min(4096, avail // _per_row_bytes(E, K, N, itemsize)))
    return max(16, (t // 16) * 16)


def _vmem_limit_bytes(tile_m, E, K, N, itemsize, cap):
    """Scoped-VMEM limit derived from the actual footprint (+ headroom), capped."""
    total = (_resident_bytes(E, K, N, itemsize)
             + tile_m * _per_row_bytes(E, K, N, itemsize) + (256 << 10))
    limit = int(total * 1.25) + (4 << 20)
    return int(max(16 << 20, min(limit, int(cap * 0.75))))


def _mine_kernel(c_ref, x12_ref, wt_ref, r_ref, s_ref, o_ref,
                 pos_acc, m_acc, l_acc, *, m_total, n_neg, k_size, tile_m):
    i = pl.program_id(0)

    @pl.when(i == 0)
    def _init():
        pos_acc[...] = jnp.zeros_like(pos_acc)
        m_acc[...] = jnp.full_like(m_acc, _NEG_SENTINEL)
        l_acc[...] = jnp.zeros_like(l_acc)

    # ---- P = C @ W.T on the MXU (bf16 operands, f32 accumulation) ----------------
    p = jnp.dot(c_ref[...], wt_ref[...], preferred_element_type=jnp.float32)  # (tm, K)

    # Lane-replicate P over the N+1 segments: p_rep[m, j*K + k] == P[m, k].
    if k_size % 128 == 0:
        # Whole-lane-tile copies: free concatenation, no extra MXU work.
        p_rep = jnp.concatenate([p] * (n_neg + 1), axis=-1)       # (tm, (N+1)K)
    else:
        # Robust fallback for unaligned K: replicate through a tiny 0/1 matrix
        # (exact in f32, K*(N+1)K MACs per row -- cheap vs the old E*(N+1)K).
        p_rep = jnp.dot(p, r_ref[...], preferred_element_type=jnp.float32)

    # ---- elementwise product in f32 (VPU), K-segment-sum on the MXU --------------
    prod = x12_ref[...].astype(jnp.float32) * p_rep                # (tm, (N+1)K)
    sums = jnp.dot(prod, s_ref[...], preferred_element_type=jnp.float32)  # (tm, N+1)
    # sums[:, 0] == positive, sums[:, 1 + n] == negative[:, n]

    lane_idx = jax.lax.broadcasted_iota(jnp.int32, sums.shape, 1)
    is_pos = lane_idx == 0

    # positive: accumulate per-slot; reduced to a scalar once, in the epilogue.
    pos_acc[...] += jnp.where(is_pos, sums, 0.0)

    # negative: pin the positive column (and padded rows) at a finite sentinel.
    neg = jnp.where(is_pos, _NEG_SENTINEL, sums)
    if m_total % tile_m != 0:   # static: only emit the mask when padding exists
        rows = jax.lax.broadcasted_iota(jnp.int32, sums.shape, 0) + i * tile_m
        neg = jnp.where(rows < m_total, neg, _NEG_SENTINEL)

    # ---- per-slot online logsumexp: VPU/EUP only, no per-step cross-lane work ----
    m_old = m_acc[...]
    m_new = jnp.maximum(m_old, neg)
    l_acc[...] = l_acc[...] * jnp.exp(m_old - m_new) + jnp.exp(neg - m_new)
    m_acc[...] = m_new

    # ---- epilogue: one full reduction + scalar combine ----------------------------
    @pl.when(i == pl.num_programs(0) - 1)
    def _finalize():
        mean_pos = jnp.sum(pos_acc[...], keepdims=True) / float(m_total)         # (1,1)
        gmax = jnp.max(m_acc[...], keepdims=True)                                # (1,1)
        ssum = jnp.sum(l_acc[...] * jnp.exp(m_acc[...] - gmax), keepdims=True)   # (1,1)
        lse = gmax + jnp.log(ssum)                                   # logsumexp(negative)
        # mean(pos) - log(mean(exp(neg - max))) - max == mean(pos) - lse + log(M*N)
        o_ref[...] = mean_pos - lse + jnp.log(float(m_total * n_neg))


def mine_time_loss(C, x1, x2, W, *, tile_m=None, compute_dtype=jnp.bfloat16):
    """C: [B,T,E], x1: [B,T,K], x2: [B,T,N,K], W: [K,E] (nn.Linear weight, no bias).

    compute_dtype is the dtype of the HBM streams / MXU operands; all accumulation is
    float32.  Pass jnp.float32 to reproduce the PyTorch module's f32 numerics.
    """
    B, T, E = C.shape
    K = x1.shape[-1]
    N = x2.shape[-2]
    M = B * T
    cols = (N + 1) * K
    cd = jnp.dtype(compute_dtype)
    itemsize = cd.itemsize

    # torch.flatten(..., 0, 1) + fuse x1 into the x2 stream (column block 0 == x1).
    Cf = C.reshape(M, E).astype(cd)
    x12 = jnp.concatenate(
        [x1.reshape(M, K), x2.reshape(M, N * K)], axis=-1).astype(cd)   # (M, (N+1)K)

    # Small resident operands.
    WT = jnp.asarray(W).T.astype(cd)                                    # (E, K)
    R = jnp.tile(jnp.eye(K, dtype=jnp.float32), (1, N + 1))             # (K, (N+1)K)
    S = jnp.kron(jnp.eye(N + 1, dtype=jnp.float32),
                 jnp.ones((K, 1), dtype=jnp.float32))                   # ((N+1)K, N+1)

    cap = _vmem_capacity_bytes()
    if tile_m is None:
        tile_m = _choose_tile_m(M, E, K, N, itemsize, _stream_budget_bytes(cap))
    tile_m = int(min(tile_m, _round_up(M, 16)))
    tile_m = max(16, (tile_m // 16) * 16)

    M_pad = _round_up(M, tile_m)
    if M_pad != M:
        pad = M_pad - M
        Cf = jnp.pad(Cf, ((0, pad), (0, 0)))
        x12 = jnp.pad(x12, ((0, pad), (0, 0)))   # zero rows: 0 positive, masked negatives

    grid = (M_pad // tile_m,)
    kernel = functools.partial(_mine_kernel, m_total=M, n_neg=N, k_size=K, tile_m=tile_m)

    cost = pl.CostEstimate(
        flops=int(2 * M_pad * E * K                # C @ W.T
                  + 2 * M_pad * K * cols           # replication (worst case)
                  + 2 * M_pad * cols * (N + 1)     # segment-sum matmul
                  + M_pad * cols),                 # elementwise product
        transcendentals=int(2 * M_pad * (N + 1)),
        bytes_accessed=int(M_pad * (E + cols) * itemsize
                           + E * K * itemsize + K * cols * 4 + cols * (N + 1) * 4 + 4),
    )

    out = pl.pallas_call(
        kernel,
        out_shape=jax.ShapeDtypeStruct((1, 1), jnp.float32),
        grid=grid,
        in_specs=[
            pl.BlockSpec((tile_m, E), lambda i: (i, 0)),       # streamed C
            pl.BlockSpec((tile_m, cols), lambda i: (i, 0)),    # streamed [x1 | x2]
            pl.BlockSpec((E, K), lambda i: (0, 0)),            # resident W.T
            pl.BlockSpec((K, cols), lambda i: (0, 0)),         # resident replication R
            pl.BlockSpec((cols, N + 1), lambda i: (0, 0)),     # resident segment-sum S
        ],
        out_specs=pl.BlockSpec((1, 1), lambda i: (0, 0)),
        scratch_shapes=[
            pltpu.VMEM((tile_m, N + 1), jnp.float32),  # per-slot positive partial sums
            pltpu.VMEM((tile_m, N + 1), jnp.float32),  # per-slot running max (online LSE)
            pltpu.VMEM((tile_m, N + 1), jnp.float32),  # per-slot running sum-of-exp
        ],
        compiler_params=pltpu.CompilerParams(
            dimension_semantics=("arbitrary",),        # sequential reduction over M tiles
            vmem_limit_bytes=_vmem_limit_bytes(tile_m, E, K, N, itemsize, cap),
        ),
        cost_estimate=cost,
        # TODO(synk): on v7x, split the M range across the two TensorCores (leading
        #   "parallel" grid axis with per-core partial (sum_pos, m, l) outputs merged
        #   by a 2-way logsumexp in plain JAX) for ~2x.
        # TODO(synk): single-buffer the resident WT/R/S specs (pipeline_mode=
        #   pl.Buffered(1)) and raise the x12 stream to Buffered(3) if profiling
        #   shows exposed DMA; kept default buffering here for lowering compatibility.
        # TODO(synk): for very large N*K, chunk the segment axis (second grid dim over
        #   S columns) so the S resident fits v7x's 64 MiB VMEM.
    )(Cf, x12, WT, R, S)
    return out[0, 0]


def _reference(C, x1, x2, W, compute_dtype=jnp.float32):
    """Plain-JAX reference: f32 math on inputs rounded to compute_dtype (matching the
    rounding the kernel's HBM streams see)."""
    cd = jnp.dtype(compute_dtype)
    B, T, E = C.shape
    K = x1.shape[-1]
    N = x2.shape[-2]
    M = B * T
    Cf = C.reshape(M, E).astype(cd).astype(jnp.float32)
    x1f = x1.reshape(M, K).astype(cd).astype(jnp.float32)
    x2f = x2.reshape(M, N, K).astype(cd).astype(jnp.float32)
    Wf = jnp.asarray(W).astype(cd).astype(jnp.float32)
    P = jnp.dot(Cf, Wf.T, precision=jax.lax.Precision.HIGHEST)
    pos = jnp.sum(x1f * P, -1)
    neg = jnp.sum(x2f * P[:, None, :], -1)
    emax = jnp.max(neg)
    return jnp.mean(pos) - jnp.log(jnp.mean(jnp.exp(neg - emax))) - emax


if __name__ == "__main__":
    key = jax.random.PRNGKey(0)

    def run_case(B, T, E, K, N, case_key, compute_dtype, rtol, atol):
        kC, kx1, kx2, kW = jax.random.split(case_key, 4)
        C = jax.random.normal(kC, (B, T, E), jnp.float32)
        x1 = jax.random.normal(kx1, (B, T, K), jnp.float32)
        x2 = jax.random.normal(kx2, (B, T, N, K), jnp.float32)
        # nn.Linear default init: U(-1/sqrt(in_features), 1/sqrt(in_features))
        bound = 1.0 / (E ** 0.5)
        W = jax.random.uniform(kW, (K, E), jnp.float32, minval=-bound, maxval=bound)
        fn = jax.jit(functools.partial(mine_time_loss, compute_dtype=compute_dtype))
        out = jax.block_until_ready(fn(C, x1, x2, W))
        ref = _reference(C, x1, x2, W, compute_dtype=compute_dtype)
        assert jnp.allclose(out, ref, rtol=rtol, atol=atol), (compute_dtype, out, ref)

    k1, k2, k3 = jax.random.split(key, 3)
    # batch=2, time=8, encoding_size=32, context_size=16, 4 negatives per (b, t)
    run_case(2, 8, 32, 16, 4, k1, jnp.bfloat16, 5e-3, 5e-3)
    # time=7 -> M=14 is not a multiple of the tile: exercises the pad + mask path
    run_case(2, 7, 32, 16, 4, k2, jnp.bfloat16, 5e-3, 5e-3)
    # f32 streams: exact PyTorch-module semantics path
    run_case(2, 8, 32, 16, 4, k3, jnp.float32, 2e-2, 2e-2)

    print("KERNEL_OK")
</pallas_src>

<mosaic_0001>
module attributes {stable_mosaic.version = 11 : i64} {
  func.func @_mine_kernel(%arg0: i32, %arg1: memref<16x32xbf16, #tpu.memory_space<vmem>>, %arg2: memref<16x80xbf16, #tpu.memory_space<vmem>>, %arg3: memref<32x16xbf16, #tpu.memory_space<vmem>>, %arg4: memref<16x80xf32, #tpu.memory_space<vmem>>, %arg5: memref<80x5xf32, #tpu.memory_space<vmem>>, %arg6: memref<1x1xf32, #tpu.memory_space<vmem>>, %arg7: memref<16x5xf32, #tpu.memory_space<vmem>>, %arg8: memref<16x5xf32, #tpu.memory_space<vmem>>, %arg9: memref<16x5xf32, #tpu.memory_space<vmem>>) attributes {dimension_semantics = [#tpu.dimension_semantics<arbitrary>], iteration_bounds = array<i64: 1>, scalar_prefetch = 0 : i64, scratch_operands = 3 : i64, tpu.core_type = #tpu.core_type<tc>, window_params = [{transform_indices = @transform_0, window_bounds = array<i64: 16, 32>}, {transform_indices = @transform_1, window_bounds = array<i64: 16, 80>}, {pipeline_mode = #tpu.pipeline_mode<synchronous>, transform_indices = @transform_2, window_bounds = array<i64: 32, 16>}, {pipeline_mode = #tpu.pipeline_mode<synchronous>, transform_indices = @transform_3, window_bounds = array<i64: 16, 80>}, {pipeline_mode = #tpu.pipeline_mode<synchronous>, transform_indices = @transform_4, window_bounds = array<i64: 80, 5>}, {pipeline_mode = #tpu.pipeline_mode<synchronous>, transform_indices = @transform_5, window_bounds = array<i64: 1, 1>}]} {
    %c0_i32 = arith.constant 0 : i32
    %0 = arith.cmpi eq, %arg0, %c0_i32 : i32
    %1 = arith.extui %0 : i1 to i32
    %c0_i32_0 = arith.constant 0 : i32
    %2 = arith.cmpi ne, %1, %c0_i32_0 : i32
    scf.if %2 {
      %cst_29 = arith.constant 0.000000e+00 : f32
      %37 = vector.broadcast %cst_29 : f32 to vector<16x5xf32>
      %c0_30 = arith.constant 0 : index
      %c0_31 = arith.constant 0 : index
      %38 = vector.load %arg7[%c0_30, %c0_31] : memref<16x5xf32, #tpu.memory_space<vmem>>, vector<16x5xf32>
      tpu.vector_store %arg7[%c0_30, %c0_31], %37 {strides = array<i32>} : memref<16x5xf32, #tpu.memory_space<vmem>>, vector<16x5xf32>,
      %cst_32 = arith.constant -1.000000e+30 : f32
      %39 = vector.broadcast %cst_32 : f32 to vector<16x5xf32>
      %c0_33 = arith.constant 0 : index
      %c0_34 = arith.constant 0 : index
      %40 = vector.load %arg8[%c0_33, %c0_34] : memref<16x5xf32, #tpu.memory_space<vmem>>, vector<16x5xf32>
      tpu.vector_store %arg8[%c0_33, %c0_34], %39 {strides = array<i32>} : memref<16x5xf32, #tpu.memory_space<vmem>>, vector<16x5xf32>,
      %cst_35 = arith.constant 0.000000e+00 : f32
      %41 = vector.broadcast %cst_35 : f32 to vector<16x5xf32>
      %c0_36 = arith.constant 0 : index
      %c0_37 = arith.constant 0 : index
      %42 = vector.load %arg9[%c0_36, %c0_37] : memref<16x5xf32, #tpu.memory_space<vmem>>, vector<16x5xf32>
      tpu.vector_store %arg9[%c0_36, %c0_37], %41 {strides = array<i32>} : memref<16x5xf32, #tpu.memory_space<vmem>>, vector<16x5xf32>,
    } else {
    }
    %c0 = arith.constant 0 : index
    %c0_1 = arith.constant 0 : index
    %3 = vector.load %arg1[%c0, %c0_1] : memref<16x32xbf16, #tpu.memory_space<vmem>>, vector<16x32xbf16>
    %c0_2 = arith.constant 0 : index
    %c0_3 = arith.constant 0 : index
    %4 = vector.load %arg3[%c0_2, %c0_3] : memref<32x16xbf16, #tpu.memory_space<vmem>>, vector<32x16xbf16>
    %cst = arith.constant dense<0.000000e+00> : vector<16x16xf32>
    %5 = tpu.matmul %3, %4, %cst {dimension_numbers = #tpu.dot_dimension_numbers<[1], [0], [0], [1], [0, 0, 1, 1], [], []>} : vector<16x32xbf16>, vector<32x16xbf16>, vector<16x16xf32> -> vector<16x16xf32>
    %c0_4 = arith.constant 0 : index
    %c0_5 = arith.constant 0 : index
    %6 = vector.load %arg4[%c0_4, %c0_5] : memref<16x80xf32, #tpu.memory_space<vmem>>, vector<16x80xf32>
    %cst_6 = arith.constant dense<0.000000e+00> : vector<16x80xf32>
    %7 = tpu.matmul %5, %6, %cst_6 {dimension_numbers = #tpu.dot_dimension_numbers<[1], [0], [0], [1], [0, 0, 1, 1], [], []>} : vector<16x16xf32>, vector<16x80xf32>, vector<16x80xf32> -> vector<16x80xf32>
    %c0_7 = arith.constant 0 : index
    %c0_8 = arith.constant 0 : index
    %8 = vector.load %arg2[%c0_7, %c0_8] : memref<16x80xbf16, #tpu.memory_space<vmem>>, vector<16x80xbf16>
    %9 = arith.extf %8 : vector<16x80xbf16> to vector<16x80xf32>
    %10 = arith.mulf %9, %7 : vector<16x80xf32>
    %c0_9 = arith.constant 0 : index
    %c0_10 = arith.constant 0 : index
    %11 = vector.load %arg5[%c0_9, %c0_10] : memref<80x5xf32, #tpu.memory_space<vmem>>, vector<80x5xf32>
    %cst_11 = arith.constant dense<0.000000e+00> : vector<16x5xf32>
    %12 = tpu.matmul %10, %11, %cst_11 {dimension_numbers = #tpu.dot_dimension_numbers<[1], [0], [0], [1], [0, 0, 1, 1], [], []>} : vector<16x80xf32>, vector<80x5xf32>, vector<16x5xf32> -> vector<16x5xf32>
    %13 = tpu.iota {dimensions = array<i32: 1>} : vector<16x5xi32>
    %c0_i32_12 = arith.constant 0 : i32
    %14 = vector.broadcast %c0_i32_12 : i32 to vector<16x5xi32>
    %15 = arith.cmpi eq, %13, %14 : vector<16x5xi32>
    %c0_13 = arith.constant 0 : index
    %c0_14 = arith.constant 0 : index
    %16 = vector.load %arg7[%c0_13, %c0_14] : memref<16x5xf32, #tpu.memory_space<vmem>>, vector<16x5xf32>
    %cst_15 = arith.constant 0.000000e+00 : f32
    %17 = vector.broadcast %cst_15 : f32 to vector<16x5xf32>
    %18 = arith.select %15, %12, %17 : vector<16x5xi1>, vector<16x5xf32>
    %19 = arith.addf %16, %18 : vector<16x5xf32>
    %c0_16 = arith.constant 0 : index
    %c0_17 = arith.constant 0 : index
    %20 = vector.load %arg7[%c0_16, %c0_17] : memref<16x5xf32, #tpu.memory_space<vmem>>, vector<16x5xf32>
    tpu.vector_store %arg7[%c0_16, %c0_17], %19 {strides = array<i32>} : memref<16x5xf32, #tpu.memory_space<vmem>>, vector<16x5xf32>,
    %cst_18 = arith.constant -1.000000e+30 : f32
    %21 = vector.broadcast %cst_18 : f32 to vector<16x5xf32>
    %22 = arith.select %15, %21, %12 : vector<16x5xi1>, vector<16x5xf32>
    %c0_19 = arith.constant 0 : index
    %c0_20 = arith.constant 0 : index
    %23 = vector.load %arg8[%c0_19, %c0_20] : memref<16x5xf32, #tpu.memory_space<vmem>>, vector<16x5xf32>
    %24 = arith.maximumf %23, %22 : vector<16x5xf32>
    %c0_21 = arith.constant 0 : index
    %c0_22 = arith.constant 0 : index
    %25 = vector.load %arg9[%c0_21, %c0_22] : memref<16x5xf32, #tpu.memory_space<vmem>>, vector<16x5xf32>
    %26 = arith.subf %23, %24 : vector<16x5xf32>
    %27 = math.exp %26 : vector<16x5xf32>
    %28 = arith.mulf %25, %27 : vector<16x5xf32>
    %29 = arith.subf %22, %24 : vector<16x5xf32>
    %30 = math.exp %29 : vector<16x5xf32>
    %31 = arith.addf %28, %30 : vector<16x5xf32>
    %c0_23 = arith.constant 0 : index
    %c0_24 = arith.constant 0 : index
    %32 = vector.load %arg9[%c0_23, %c0_24] : memref<16x5xf32, #tpu.memory_space<vmem>>, vector<16x5xf32>
    tpu.vector_store %arg9[%c0_23, %c0_24], %31 {strides = array<i32>} : memref<16x5xf32, #tpu.memory_space<vmem>>, vector<16x5xf32>,
    %c0_25 = arith.constant 0 : index
    %c0_26 = arith.constant 0 : index
    %33 = vector.load %arg8[%c0_25, %c0_26] : memref<16x5xf32, #tpu.memory_space<vmem>>, vector<16x5xf32>
    tpu.vector_store %arg8[%c0_25, %c0_26], %24 {strides = array<i32>} : memref<16x5xf32, #tpu.memory_space<vmem>>, vector<16x5xf32>,
    %c0_i32_27 = arith.constant 0 : i32
    %34 = arith.cmpi eq, %arg0, %c0_i32_27 : i32
    %35 = arith.extui %34 : i1 to i32
    %c0_i32_28 = arith.constant 0 : i32
    %36 = arith.cmpi ne, %35, %c0_i32_28 : i32
    scf.if %36 {
      %c0_29 = arith.constant 0 : index
      %c0_30 = arith.constant 0 : index
      %37 = vector.load %arg7[%c0_29, %c0_30] : memref<16x5xf32, #tpu.memory_space<vmem>>, vector<16x5xf32>
      %38 = vector.shape_cast %37 : vector<16x5xf32> to vector<1x16x5xf32>
      %cst_31 = arith.constant dense<0.000000e+00> : vector<1xf32>
      %39 = vector.multi_reduction <add>, %38, %cst_31 [1, 2] : vector<1x16x5xf32> to vector<1xf32>
      %40 = vector.shape_cast %39 : vector<1xf32> to vector<1x1x1xf32>
      %41 = vector.extract %40[0, 0, 0] : f32 from vector<1x1x1xf32>
      %42 = vector.broadcast %41 : f32 to vector<1x1xf32>
      %cst_32 = arith.constant 1.600000e+01 : f32
      %43 = vector.broadcast %cst_32 : f32 to vector<1x1xf32>
      %44 = arith.divf %42, %43 : vector<1x1xf32>
      %c0_33 = arith.constant 0 : index
      %c0_34 = arith.constant 0 : index
      %45 = vector.load %arg8[%c0_33, %c0_34] : memref<16x5xf32, #tpu.memory_space<vmem>>, vector<16x5xf32>
      %46 = vector.shape_cast %45 : vector<16x5xf32> to vector<1x16x5xf32>
      %cst_35 = arith.constant dense<0xFF800000> : vector<1xf32>
      %47 = vector.multi_reduction <maximumf>, %46, %cst_35 [1, 2] : vector<1x16x5xf32> to vector<1xf32>
      %48 = vector.shape_cast %47 : vector<1xf32> to vector<1x1x1xf32>
      %49 = vector.extract %48[0, 0, 0] : f32 from vector<1x1x1xf32>
      %50 = vector.broadcast %49 : f32 to vector<1x1xf32>
      %c0_36 = arith.constant 0 : index
      %c0_37 = arith.constant 0 : index
      %51 = vector.load %arg9[%c0_36, %c0_37] : memref<16x5xf32, #tpu.memory_space<vmem>>, vector<16x5xf32>
      %c0_38 = arith.constant 0 : index
      %c0_39 = arith.constant 0 : index
      %52 = vector.load %arg8[%c0_38, %c0_39] : memref<16x5xf32, #tpu.memory_space<vmem>>, vector<16x5xf32>
      %53 = vector.broadcast %50 : vector<1x1xf32> to vector<16x5xf32>
      %54 = arith.subf %52, %53 : vector<16x5xf32>
      %55 = math.exp %54 : vector<16x5xf32>
      %56 = arith.mulf %51, %55 : vector<16x5xf32>
      %57 = vector.shape_cast %56 : vector<16x5xf32> to vector<1x16x5xf32>
      %cst_40 = arith.constant dense<0.000000e+00> : vector<1xf32>
      %58 = vector.multi_reduction <add>, %57, %cst_40 [1, 2] : vector<1x16x5xf32> to vector<1xf32>
      %59 = vector.shape_cast %58 : vector<1xf32> to vector<1x1x1xf32>
      %60 = vector.extract %59[0, 0, 0] : f32 from vector<1x1x1xf32>
      %61 = vector.broadcast %60 : f32 to vector<1x1xf32>
      %62 = math.log %61 : vector<1x1xf32>
      %63 = arith.addf %50, %62 : vector<1x1xf32>
      %64 = arith.subf %44, %63 : vector<1x1xf32>
      %cst_41 = arith.constant 6.400000e+01 : f32
      %65 = math.log %cst_41 : f32
      %66 = vector.broadcast %65 : f32 to vector<1x1xf32>
      %67 = arith.addf %64, %66 : vector<1x1xf32>
      %c0_42 = arith.constant 0 : index
      %c0_43 = arith.constant 0 : index
      %68 = vector.load %arg6[%c0_42, %c0_43] : memref<1x1xf32, #tpu.memory_space<vmem>>, vector<1x1xf32>
      tpu.vector_store %arg6[%c0_42, %c0_43], %67 {strides = array<i32>} : memref<1x1xf32, #tpu.memory_space<vmem>>, vector<1x1xf32>,
    } else {
    }
    return
  }
  func.func @transform_0(%arg0: i32) -> (i32, i32) {
    %c0_i32 = arith.constant 0 : i32
    %c0_i32_0 = arith.constant 0 : i32
    return %arg0, %c0_i32 : i32, i32
  }
  func.func @transform_1(%arg0: i32) -> (i32, i32) {
    %c0_i32 = arith.constant 0 : i32
    %c0_i32_0 = arith.constant 0 : i32
    return %arg0, %c0_i32 : i32, i32
  }
  func.func @transform_2(%arg0: i32) -> (i32, i32) {
    %c0_i32 = arith.constant 0 : i32
    %c0_i32_0 = arith.constant 0 : i32
    %c0_i32_1 = arith.constant 0 : i32
    return %c0_i32, %c0_i32_0 : i32, i32
  }
  func.func @transform_3(%arg0: i32) -> (i32, i32) {
    %c0_i32 = arith.constant 0 : i32
    %c0_i32_0 = arith.constant 0 : i32
    %c0_i32_1 = arith.constant 0 : i32
    return %c0_i32, %c0_i32_0 : i32, i32
  }
  func.func @transform_4(%arg0: i32) -> (i32, i32) {
    %c0_i32 = arith.constant 0 : i32
    %c0_i32_0 = arith.constant 0 : i32
    %c0_i32_1 = arith.constant 0 : i32
    return %c0_i32, %c0_i32_0 : i32, i32
  }
  func.func @transform_5(%arg0: i32) -> (i32, i32) {
    %c0_i32 = arith.constant 0 : i32
    %c0_i32_0 = arith.constant 0 : i32
    %c0_i32_1 = arith.constant 0 : i32
    return %c0_i32, %c0_i32_0 : i32, i32
  }
}

</mosaic_0001>

<llo_original>
// kernel: tile.9
$region0: #{tile.9}
  %s0 = inlined_call_operand.vmem [shape: f32[16,5,16], index: 0, kind: input, shape index: {}]
  %s1 = inlined_call_operand.vmem [shape: f32[16,80], index: 1, kind: output, shape index: {}]
  %v2 = vld [vmem:[%s0] ss:$8 sm:$0xf]
  %v3 = vld [vmem:[%s0] ss:$8 sm:$0xf0]
  %vm4 = vcmask 1047556
  %v5 = vsel %vm4, %v3, %v2
  %vm6 = vcmask 130048
  %7 = vst.msk [vmem:[%s1] sm:$0xff] %vm6, %v5
  %s8 = scalar_lea.vmem %s0, 64
  %v9 = vld [vmem:[%s8] ss:$8 sm:$0xf]
  %s10 = scalar_lea.vmem %s0, 64
  %v11 = vld [vmem:[%s10] ss:$8 sm:$0xf0]
  %vm12 = vcmask 1047556
  %v13 = vsel %vm12, %v11, %v9
  %vm14 = vcmask 130048
  %s15 = scalar_lea.vmem %s1, 8
  %16 = vst.msk [vmem:[%s15] sm:$0xff] %vm14, %v13
  %s17 = scalar_lea.vmem %s0, 4
  %v18 = vld [vmem:[%s17] ss:$8 sm:$0xf]
  %s19 = scalar_lea.vmem %s0, 4
  %v20 = vld [vmem:[%s19] ss:$8 sm:$0xf0]
  %vm21 = vcmask 1047556
  %v22 = vsel %vm21, %v20, %v18
  %23 = vrot.lane.b32.xlu0 %v22, 64
  %v24 = vpop.permute.xlu0 %23
  %vm25 = vcmask 654848
  %26 = vst.msk [vmem:[%s1] sm:$0xff] %vm25, %v24
  %s27 = scalar_lea.vmem %s0, 68
  %v28 = vld [vmem:[%s27] ss:$8 sm:$0xf]
  %s29 = scalar_lea.vmem %s0, 68
  %v30 = vld [vmem:[%s29] ss:$8 sm:$0xf0]
  %vm31 = vcmask 1047556
  %v32 = vsel %vm31, %v30, %v28
  %33 = vrot.lane.b32.xlu0 %v32, 64
  %v34 = vpop.permute.xlu0 %33
  %vm35 = vcmask 654848
  %s36 = scalar_lea.vmem %s1, 8
  %37 = vst.msk [vmem:[%s36] sm:$0xff] %vm35, %v34
  %s38 = scalar_lea.vmem %s0, 3
  %v39 = vld [vmem:[%s38] ss:$8 sm:$0xf]
  %s40 = scalar_lea.vmem %s0, 3
  %v41 = vld [vmem:[%s40] ss:$8 sm:$0xf0]
  %vm42 = vcmask 1047556
  %v43 = vsel %vm42, %v41, %v39
  %44 = vrot.lane.b32.xlu0 %v43, 48
  %v45 = vpop.permute.xlu0 %44
  %vm46 = vcmask 523648
  %47 = vst.msk [vmem:[%s1] sm:$0xff] %vm46, %v45
  %s48 = scalar_lea.vmem %s0, 67
  %v49 = vld [vmem:[%s48] ss:$8 sm:$0xf]
  %s50 = scalar_lea.vmem %s0, 67
  %v51 = vld [vmem:[%s50] ss:$8 sm:$0xf0]
  %vm52 = vcmask 1047556
  %v53 = vsel %vm52, %v51, %v49
  %54 = vrot.lane.b32.xlu0 %v53, 48
  %v55 = vpop.permute.xlu0 %54
  %vm56 = vcmask 523648
  %s57 = scalar_lea.vmem %s1, 8
  %58 = vst.msk [vmem:[%s57] sm:$0xff] %vm56, %v55
  %s59 = scalar_lea.vmem %s0, 2
  %v60 = vld [vmem:[%s59] ss:$8 sm:$0xf]
  %s61 = scalar_lea.vmem %s0, 2
  %v62 = vld [vmem:[%s61] ss:$8 sm:$0xf0]
  %vm63 = vcmask 1047556
  %v64 = vsel %vm63, %v62, %v60
  %65 = vrot.lane.b32.xlu0 %v64, 32
  %v66 = vpop.permute.xlu0 %65
  %vm67 = vcmask 392448
  %68 = vst.msk [vmem:[%s1] sm:$0xff] %vm67, %v66
  %s69 = scalar_lea.vmem %s0, 66
  %v70 = vld [vmem:[%s69] ss:$8 sm:$0xf]
  %s71 = scalar_lea.vmem %s0, 66
  %v72 = vld [vmem:[%s71] ss:$8 sm:$0xf0]
  %vm73 = vcmask 1047556
  %v74 = vsel %vm73, %v72, %v70
  %75 = vrot.lane.b32.xlu0 %v74, 32
  %v76 = vpop.permute.xlu0 %75
  %vm77 = vcmask 392448
  %s78 = scalar_lea.vmem %s1, 8
  %79 = vst.msk [vmem:[%s78] sm:$0xff] %vm77, %v76
  %s80 = scalar_lea.vmem %s0, 1
  %v81 = vld [vmem:[%s80] ss:$8 sm:$0xf]
  %s82 = scalar_lea.vmem %s0, 1
  %v83 = vld [vmem:[%s82] ss:$8 sm:$0xf0]
  %vm84 = vcmask 1047556
  %v85 = vsel %vm84, %v83, %v81
  %86 = vrot.lane.b32.xlu0 %v85, 16
  %v87 = vpop.permute.xlu0 %86
  %vm88 = vcmask 261248
  %89 = vst.msk [vmem:[%s1] sm:$0xff] %vm88, %v87
  %s90 = scalar_lea.vmem %s0, 65
  %v91 = vld [vmem:[%s90] ss:$8 sm:$0xf]
  %s92 = scalar_lea.vmem %s0, 65
  %v93 = vld [vmem:[%s92] ss:$8 sm:$0xf0]
  %vm94 = vcmask 1047556
  %v95 = vsel %vm94, %v93, %v91
  %96 = vrot.lane.b32.xlu0 %v95, 16
  %v97 = vpop.permute.xlu0 %96
  %vm98 = vcmask 261248
  %s99 = scalar_lea.vmem %s1, 8
  %100 = vst.msk [vmem:[%s99] sm:$0xff] %vm98, %v97

// kernel: mine_time_loss.1
$region0: #{mine_time_loss.1}
  #allocation0 [shape = 'u32[]', space=smem, size = 0x4, offset = 0x4, fixed_abs, tag = 'smem constant byte address 0x4 - core index']
  #allocation1 [shape = 'u32[72,128]{1,0:T(1,128)}', space=vmem, size = 0x9000, scoped, tag = 'internal scratch']
  #allocation2 [shape = 'f32[16,5]{1,0:T(8,128)}', space=vmem, size = 0x2000, scoped, tag = 'scratch operand']
  #allocation3 [shape = 'f32[16,5]{1,0:T(8,128)}', space=vmem, size = 0x2000, scoped, tag = 'scratch operand']
  #allocation4 [shape = 'f32[16,5]{1,0:T(8,128)}', space=vmem, size = 0x2000, scoped, tag = 'scratch operand']
  %s0 = inlined_call_operand.vmem [shape: bf16[16,32], index: 0, kind: input, shape index: {}]
  %s1 = inlined_call_operand.vmem [shape: bf16[16,80], index: 1, kind: input, shape index: {}]
  %s2 = inlined_call_operand.vmem [shape: bf16[32,16], index: 2, kind: input, shape index: {}]
  %s3 = inlined_call_operand.vmem [shape: f32[16,80], index: 3, kind: input, shape index: {}]
  %s4 = inlined_call_operand.vmem [shape: f32[80,5], index: 4, kind: input, shape index: {}]
  %s5 = inlined_call_operand.hbm [shape: f32[1,1], index: 5, kind: output, shape index: {}]
  %s6 = sld [smem:[#allocation0]]
  $region38: #{mine_time_loss.1} parent=0
    _
  %s8 = ssub.s32 1, %s6
  %s9 = scalar_select 0, %s8, %s6
  $region1: #{mine_time_loss.1} parent=0
    #allocation5 [shape = 'u8[512]{0}', space=vmem, size = 0x400, scoped, tag = 'output window, operand 0, single buffered']
    #allocation6 [shape = 's32[1]{0}', space=sflag, size = 0x4, scoped, tag = 'scoped memory for mine_time_loss.1']
    %10 = vsyncpa [#allocation6], 0
    // Predicated region
    $region2: #{mine_time_loss.1} parent=1 // pred_check
      _
    $region3: #{mine_time_loss.1} parent=1 // pred_check_branch
      %12 = sbr.rel (0) target = $region5
    $region4: #{mine_time_loss.1} parent=1 // pred_region
      _
    $region5: #{mine_time_loss.1} parent=1 // pred_fallthru
      _
    // Predicated region
    $region6: #{mine_time_loss.1} parent=1 // pred_check
      _
    $region7: #{mine_time_loss.1} parent=1 // pred_check_branch
      %14 = sbr.rel (0) target = $region9
    $region8: #{mine_time_loss.1} parent=1 // pred_region
      _
    $region9: #{mine_time_loss.1} parent=1 // pred_fallthru
      _
    // Predicated region
    $region10: #{mine_time_loss.1} parent=1 // pred_check
      _
    $region11: #{mine_time_loss.1} parent=1 // pred_check_branch
      %16 = sbr.rel (0) target = $region13
    $region12: #{mine_time_loss.1} parent=1 // pred_region
      _
    $region13: #{mine_time_loss.1} parent=1 // pred_fallthru
      _
    // Predicated region
    $region14: #{mine_time_loss.1} parent=1 // pred_check
      _
    $region15: #{mine_time_loss.1} parent=1 // pred_check_branch
      %18 = sbr.rel (0) target = $region17
    $region16: #{mine_time_loss.1} parent=1 // pred_region
      _
    $region17: #{mine_time_loss.1} parent=1 // pred_fallthru
      _
    // Predicated region
    $region18: #{mine_time_loss.1} parent=1 // pred_check
      _
    $region19: #{mine_time_loss.1} parent=1 // pred_check_branch
      %20 = sbr.rel (0) target = $region21
    $region20: #{mine_time_loss.1} parent=1 // pred_region
      _
    $region21: #{mine_time_loss.1} parent=1 // pred_fallthru
      _
    %p22 = scmp.eq.s32.totalorder 0, 0
    // Predicated region
    $region22: #{mine_time_loss.1} parent=1 // pred_check
      %p23 = pneg %p22
    $region23: #{mine_time_loss.1} parent=1 // pred_check_branch
      %25 = sbr.rel (%p23) target = $region25
    $region24: #{mine_time_loss.1} parent=1 // pred_region
      %vm26 = vcmask 39936
      %27 = vst.msk [vmem:[#allocation2] sm:$0xff] %vm26, 0.0
      %28 = vst.msk [vmem:[#allocation2 + $0x8] sm:$0xff] %vm26, 0.0
      %29 = vst.msk [vmem:[#allocation3] sm:$0xff] %vm26, -1e+30
      %30 = vst.msk [vmem:[#allocation3 + $0x8] sm:$0xff] %vm26, -1e+30
      %31 = vst.msk [vmem:[#allocation4] sm:$0xff] %vm26, 0.0
      %32 = vst.msk [vmem:[#allocation4 + $0x8] sm:$0xff] %vm26, 0.0
    $region25: #{mine_time_loss.1} parent=1 // pred_fallthru
      _
    %v33 = vld [vmem:[%s0] sm:$0xf]
    %v34 = vld [vmem:[%s0 + $0x4] sm:$0xf]
    %v35 = vld [vmem:[%s2] sm:$0xf]
    %v36 = vld [vmem:[%s2 + $0x4] sm:$0xf]
    %v37 = vld [vmem:[%s2 + $0x8] sm:$0xf]
    %v38 = vld [vmem:[%s2 + $0xc] sm:$0xf]
    %v41 = vunpack.c.l.b16 %v33
    %v42 = vunpack.c.l.b16 %v34
    %v43 = vpack.c.b16 %v42, %v41
    %v48 = vunpack.c.l.b16 %v35
    %v49 = vunpack.c.l.b16 %v36
    %v50 = vunpack.c.l.b16 %v37
    %v51 = vunpack.c.l.b16 %v38
    %v52 = vpack.c.b16 %v49, %v48
    %v53 = vpack.c.b16 %v51, %v50
    %vm56 = vcmask 261120
    %v58 = vsel %vm56, %v43, 0
    %60 = vmatpush.bf16.msra.mxu0 0
    %61 = vmatpush.bf16.msra.mxu0 0
    %62 = vmatpush.bf16.msra.mxu0 0
    %63 = vmatpush.bf16.msra.mxu0 0
    %64 = vmatpush.bf16.msra.mxu0 0
    %65 = vmatpush.bf16.msra.mxu0 0
    %66 = vmatpush.bf16.msra.mxu0 %v53
    %67 = vmatpush.bf16.msra.mxu0 %v52
    %68 = vmatmul.bf16.gmra.mxu0 %v58
    %v69 = vpop.f32.mrf.mxu0
    %v70 = vadd.f32 0.0, %v69
    %v71 = vpop.f32.mrf.mxu0
    %v72 = vadd.f32 0.0, %v71
    %73 = vdwg.mxu0
    %v74 = vld [vmem:[%s3] sm:$0xff]
    %v75 = vld [vmem:[%s3 + $0x8] sm:$0xff]
    %vm76 = vcmask 130048
    %v78 = vsel %vm76, %v70, 0
    %v81 = vsel %vm76, %v72, 0
    %83 = vmatpush.msra.mxu0 0.0
    %84 = vmatpush.msra.mxu0 0.0
    %85 = vmatpush.msra.mxu0 0.0
    %86 = vmatpush.msra.mxu0 0.0
    %87 = vmatpush.msra.mxu0 0.0
    %88 = vmatpush.msra.mxu0 0.0
    %89 = vmatpush.msra.mxu0 0.0
    %90 = vmatpush.msra.mxu0 0.0
    %91 = vmatpush.msra.mxu0 0.0
    %92 = vmatpush.msra.mxu0 0.0
    %93 = vmatpush.msra.mxu0 0.0
    %94 = vmatpush.msra.mxu0 0.0
    %95 = vmatpush.msra.mxu0 0.0
    %96 = vmatpush.msra.mxu0 0.0
    %97 = vmatpush.msra.mxu0 %v75
    %98 = vmatpush.msra.mxu0 %v74
    %99 = vmatmul.f32.gmra.mxu0 %v78
    %v100 = vpop.f32.mrf.mxu0
    %v101 = vadd.f32 0.0, %v100
    %102 = vmatmul.f32.gmra.mxu0 %v81
    %v103 = vpop.f32.mrf.mxu0
    %v104 = vadd.f32 0.0, %v103
    %105 = vdwg.mxu0
    %v106 = vld [vmem:[%s1] sm:$0xf]
    %v107 = vld [vmem:[%s1 + $0x4] sm:$0xf]
    %v108 = vunpack.c.l.bf16 %v106
    %v109 = vunpack.c.l.bf16 %v107
    %v110 = vmul.f32 %v108, %v101
    %v111 = vmul.f32 %v109, %v104
    %v112 = vld [vmem:[%s4] sm:$0xff]
    %v113 = vld [vmem:[%s4 + $0x8] sm:$0xff]
    %v114 = vld [vmem:[%s4 + $0x10] sm:$0xff]
    %v115 = vld [vmem:[%s4 + $0x18] sm:$0xff]
    %v116 = vld [vmem:[%s4 + $0x20] sm:$0xff]
    %v117 = vld [vmem:[%s4 + $0x28] sm:$0xff]
    %v118 = vld [vmem:[%s4 + $0x30] sm:$0xff]
    %v119 = vld [vmem:[%s4 + $0x38] sm:$0xff]
    %v120 = vld [vmem:[%s4 + $0x40] sm:$0xff]
    %v121 = vld [vmem:[%s4 + $0x48] sm:$0xff]
    %vm122 = vcmask 654336
    %v124 = vsel %vm122, %v110, 0
    %v127 = vsel %vm122, %v111, 0
    %129 = vmatpush.msra.mxu0 0.0
    %130 = vmatpush.msra.mxu0 0.0
    %131 = vmatpush.msra.mxu0 0.0
    %132 = vmatpush.msra.mxu0 0.0
    %133 = vmatpush.msra.mxu0 0.0
    %134 = vmatpush.msra.mxu0 0.0
    %135 = vmatpush.msra.mxu0 %v121
    %136 = vmatpush.msra.mxu0 %v120
    %137 = vmatpush.msra.mxu0 %v119
    %138 = vmatpush.msra.mxu0 %v118
    %139 = vmatpush.msra.mxu0 %v117
    %140 = vmatpush.msra.mxu0 %v116
    %141 = vmatpush.msra.mxu0 %v115
    %142 = vmatpush.msra.mxu0 %v114
    %143 = vmatpush.msra.mxu0 %v113
    %144 = vmatpush.msra.mxu0 %v112
    %145 = vmatmul.f32.gmra.mxu0 %v124
    %v146 = vpop.f32.mrf.mxu0
    %v147 = vadd.f32 0.0, %v146
    %148 = vmatmul.f32.gmra.mxu0 %v127
    %v149 = vpop.f32.mrf.mxu0
    %v150 = vadd.f32 0.0, %v149
    %151 = vdwg.mxu0
    %v152 = vlaneseq
    %v153 = vand.u32 %v152, 127
    %vm154 = vcmp.eq.s32.totalorder %v153, 0
    %v155 = vld [vmem:[#allocation2] sm:$0xff]
    %v156 = vld [vmem:[#allocation2 + $0x8] sm:$0xff]
    %v157 = vsel %vm154, %v147, 0.0
    %v158 = vsel %vm154, %v150, 0.0
    %v159 = vadd.f32 %v155, %v157
    %v160 = vadd.f32 %v156, %v158
    %vm161 = vcmask 39936
    %162 = vst.msk [vmem:[#allocation2] sm:$0xff] %vm161, %v159
    %163 = vst.msk [vmem:[#allocation2 + $0x8] sm:$0xff] %vm161, %v160
    %v164 = vsel %vm154, -1e+30, %v147
    %v165 = vsel %vm154, -1e+30, %v150
    %v166 = vld [vmem:[#allocation3] sm:$0xff]
    %v167 = vld [vmem:[#allocation3 + $0x8] sm:$0xff]
    %v168 = vmax.f32 %v166, %v164
    %v169 = vmax.f32 %v167, %v165
    %v170 = vld [vmem:[#allocation4] sm:$0xff]
    %v171 = vld [vmem:[#allocation4 + $0x8] sm:$0xff]
    %v172 = vsub.f32 %v166, %v168
    %v173 = vsub.f32 %v167, %v169
    %v174 = vmul.f32 %v172, 1.442695
    %v175 = vpow.pop %v174
    %v176 = vmul.f32 %v173, 1.442695
    %v177 = vpow.pop %v176
    %v178 = vmul.f32 %v170, %v175
    %v179 = vmul.f32 %v171, %v177
    %v180 = vsub.f32 %v164, %v168
    %v181 = vsub.f32 %v165, %v169
    %v182 = vmul.f32 %v180, 1.442695
    %v183 = vpow.pop %v182
    %v184 = vmul.f32 %v181, 1.442695
    %v185 = vpow.pop %v184
    %v186 = vadd.f32 %v178, %v183
    %v187 = vadd.f32 %v179, %v185
    %188 = vst.msk [vmem:[#allocation4] sm:$0xff] %vm161, %v186
    %189 = vst.msk [vmem:[#allocation4 + $0x8] sm:$0xff] %vm161, %v187
    %190 = vst.msk [vmem:[#allocation3] sm:$0xff] %vm161, %v168
    %191 = vst.msk [vmem:[#allocation3 + $0x8] sm:$0xff] %vm161, %v169
    // Predicated region
    $region26: #{mine_time_loss.1} parent=1 // pred_check
      %p192 = pneg %p22
    $region27: #{mine_time_loss.1} parent=1 // pred_check_branch
      %194 = sbr.rel (%p192) target = $region29
    $region28: #{mine_time_loss.1} parent=1 // pred_region
      %v195 = vld [vmem:[#allocation2] sm:$0xff]
      %v196 = vld [vmem:[#allocation2 + $0x8] sm:$0xff]
      %v197 = vsel %vm161, %v195, 0.0
      %v198 = vsel %vm161, %v196, 0.0
      %v199 = vadd.f32 %v197, %v198
      %200 = vadd.xlane.f32.xlu0 %v199
      %v201 = vpop.xlane.xlu0 %200
      %v202 = vrot.slane %v201, 4
      %v203 = vadd.f32 %v201, %v202
      %v204 = vrot.slane %v203, 2
      %v205 = vadd.f32 %v203, %v204
      %v206 = vrot.slane %v205, 1
      %v207 = vadd.f32 %v205, %v206
      %s208 = vtos %v207
      %v209 = vstv %s208
      %v210 = vrcp.pop 16.0
      %v211 = vmul.f32 16.0, %v210
      %v212 = vsub.f32 1.0, %v211
      %v213 = vmul.f32 %v210, %v212
      %v214 = vadd.f32 %v210, %v213
      %vm215 = vweird.f32 %v210
      %v216 = vsel %vm215, %v210, %v214
      %v217 = vmul.f32 %v209, %v216
      %v218 = vld [vmem:[#allocation3] sm:$0xff]
      %v219 = vld [vmem:[#allocation3 + $0x8] sm:$0xff]
      %v220 = vsel %vm161, %v218, -inf
      %v221 = vsel %vm161, %v219, -inf
      %v222 = vmax.f32 %v220, %v221
      %223 = vmax.xlane.f32.xlu0 %v222
      %v224 = vpop.xlane.xlu0 %223
      %v225 = vrot.slane %v224, 4
      %v226 = vmax.f32 %v224, %v225
      %v227 = vrot.slane %v226, 2
      %v228 = vmax.f32 %v226, %v227
      %v229 = vrot.slane %v228, 1
      %v230 = vmax.f32 %v228, %v229
      %s231 = vtos %v230
      %v232 = vstv %s231
      %v233 = vld [vmem:[#allocation4] sm:$0xff]
      %v234 = vld [vmem:[#allocation4 + $0x8] sm:$0xff]
      %v235 = vsub.f32 %v218, %v232
      %v236 = vsub.f32 %v219, %v232
      %v237 = vmul.f32 %v235, 1.442695
      %v238 = vpow.pop %v237
      %v239 = vmul.f32 %v236, 1.442695
      %v240 = vpow.pop %v239
      %v241 = vmul.f32 %v233, %v238
      %v242 = vmul.f32 %v234, %v240
      %v243 = vsel %vm161, %v241, 0.0
      %v244 = vsel %vm161, %v242, 0.0
      %v245 = vadd.f32 %v243, %v244
      %246 = vadd.xlane.f32.xlu0 %v245
      %v247 = vpop.xlane.xlu0 %246
      %v248 = vrot.slane %v247, 4
      %v249 = vadd.f32 %v247, %v248
      %v250 = vrot.slane %v249, 2
      %v251 = vadd.f32 %v249, %v250
      %v252 = vrot.slane %v251, 1
      %v253 = vadd.f32 %v251, %v252
      %s254 = vtos %v253
      %v255 = vstv %s254
      %v256 = vlog2.pop %v255
      %v257 = vmul.f32 %v256, 0.6931472
      %v258 = vadd.f32 %v232, %v257
      %v259 = vsub.f32 %v217, %v258
      %v260 = vadd.f32 %v259, 4.158883
      %vm261 = vcmask 0
      %262 = vst.msk [vmem:[#allocation5] sm:$0x1] %vm261, %v260
    $region29: #{mine_time_loss.1} parent=1 // pred_fallthru
      _
    // Predicated region
    $region30: #{mine_time_loss.1} parent=1 // pred_check
      _
    $region31: #{mine_time_loss.1} parent=1 // pred_check_branch
      %264 = sbr.rel (0) target = $region33
    $region32: #{mine_time_loss.1} parent=1 // pred_region
      %266 = vsyncadd [#allocation6], 0
      %s268 = sshll.u32 [#allocation5], 4
      %s269 = int_to_ptr.vmem [resolvable:$true] %s268
      %s270 = sshll.u32 %s5, 4
      %s271 = int_to_ptr.hbm [resolvable:$true] %s270
      %273 = dma.vmem_to_hbm [thread:$0]  %s269, 16, %s271, [#allocation6]
    $region33: #{mine_time_loss.1} parent=1 // pred_fallthru
      _
    // Predicated region
    $region34: #{mine_time_loss.1} parent=1 // pred_check
      _
    $region35: #{mine_time_loss.1} parent=1 // pred_check_branch
      %275 = sbr.rel (0) target = $region37
    $region36: #{mine_time_loss.1} parent=1 // pred_region
      %277 = dma.done [#allocation6], 16
    $region37: #{mine_time_loss.1} parent=1 // pred_fallthru
      _
    %278 = vsyncpa [#allocation6], 1

</llo_original>
